<compile_context>
chip_gen: v5e
topology: v5e:2x2
jax: 0.10.0
libtpu: 0.0.40
codegen_flags: <defaults>
</compile_context>

<pallas_src>
import functools

import jax
import jax.numpy as jnp
from jax import lax
from jax.experimental import pallas as pl
from jax.experimental.pallas import tpu as pltpu


_SUBLANE = 8
_LANE = 128


def _round_up(x, m):
    return (x + m - 1) // m * m


def _attention_kernel(emb_ref, w12_ref, b12_ref, out_ref, *, eq):
    """One window per grid step.

    emb_ref : (1, Wp, EQ)      window embedding (zero-padded)
    w12_ref : (EQ, EQ + HP)    fused [w1.T | w2.T] weights (resident)
    b12_ref : (1, EQ + HP)     fused [b1 | b2] bias       (resident)
    out_ref : (1, Wp, HP)      lane-dense output
    """
    emb = emb_ref[0]                                          # (Wp, EQ)

    # Fused fc1/fc2: a single MXU matmul, then lane-aligned slices.
    qv = jnp.dot(emb, w12_ref[...], preferred_element_type=jnp.float32)
    qv = qv + b12_ref[...]                                    # (Wp, EQ+HP) f32
    q = qv[:, :eq]                                            # fc1(emb) (+ zero pad cols)
    v = qv[:, eq:]                                            # fc2(emb) (+ zero pad cols)

    # fc1(emb) @ emb.T  — contract feature dims (padded cols are zero on both sides).
    scores = lax.dot_general(
        q.astype(emb.dtype), emb, (((1,), (1,)), ((), ())),
        preferred_element_type=jnp.float32)                   # (Wp, Wp)

    wp = scores.shape[0]
    row = lax.broadcasted_iota(jnp.int32, (wp, wp), 0)
    col = lax.broadcasted_iota(jnp.int32, (wp, wp), 1)
    # Faithful to the PyTorch quirk:
    #   mask = tril(x); mask[mask == 0] = -inf; x = x + mask
    # folded into one select: lower-triangle nonzero logits are doubled,
    # everything else becomes -inf.
    x = jnp.where((row >= col) & (scores != 0.0), scores + scores, -jnp.inf)

    # Row-wise softmax (dim=1 of the 2-D matrix); denominator on the EUP.
    m = jnp.max(x, axis=-1, keepdims=True)
    e = jnp.exp(x - m)
    p = e * pl.reciprocal(jnp.sum(e, axis=-1, keepdims=True), approx=True)

    # softmax(x) @ fc2(emb)  ->  (Wp, HP), full-lane store.
    out_ref[0] = jnp.dot(p.astype(emb.dtype), v.astype(emb.dtype),
                         preferred_element_type=jnp.float32)


def batched_single_headed_attention(emb_batch, w1, b1, w2, b2, *,
                                    matmul_dtype=jnp.float32):
    """emb_batch: (B, W, E) batch of windows; returns (B, W, H)."""
    B, W, E = emb_batch.shape
    H = w2.shape[0]

    Wp = _round_up(W, _SUBLANE)       # sublane-aligned window length
    EQ = _round_up(E, _LANE)          # lane-aligned feature dim == q-segment width
    HP = _round_up(H, _LANE)          # lane-aligned v-segment width (lane-dense output)

    # Glue: zero-pad and fuse the weights.  w1/w2 come in PyTorch (out, in)
    # layout; pre-transpose to (in, out) so the kernel runs row-major matmuls.
    emb_p = jnp.pad(emb_batch, ((0, 0), (0, Wp - W), (0, EQ - E))).astype(matmul_dtype)
    w1_t = jnp.pad(w1.T, ((0, EQ - E), (0, EQ - E)))          # (EQ, EQ)
    w2_t = jnp.pad(w2.T, ((0, EQ - E), (0, HP - H)))          # (EQ, HP)
    w12 = jnp.concatenate([w1_t, w2_t], axis=1).astype(matmul_dtype)   # (EQ, EQ+HP)
    b12 = jnp.concatenate([jnp.pad(b1, (0, EQ - E)),
                           jnp.pad(b2, (0, HP - H))]).reshape(1, EQ + HP)
    b12 = b12.astype(jnp.float32)

    kernel = functools.partial(_attention_kernel, eq=EQ)

    out = pl.pallas_call(
        kernel,
        out_shape=jax.ShapeDtypeStruct((B, Wp, HP), jnp.float32),
        grid=(B,),
        in_specs=[
            pl.BlockSpec((1, Wp, EQ), lambda b: (b, 0, 0)),        # per-window emb
            pl.BlockSpec((EQ, EQ + HP), lambda b: (0, 0)),         # fused weights (resident)
            pl.BlockSpec((1, EQ + HP), lambda b: (0, 0)),          # fused bias (resident)
        ],
        out_specs=pl.BlockSpec((1, Wp, HP), lambda b: (b, 0, 0)),
        compiler_params=pltpu.CompilerParams(
            dimension_semantics=("parallel",)),                    # 2 TCs on v7x
    )(emb_p, w12, b12)

    return out[:, :W, :H]


def single_headed_attention(embedding_matrix, w1, b1, w2, b2, *,
                            matmul_dtype=jnp.float32):
    """embedding_matrix: (1, W, E) like the PyTorch module; returns (W, H)."""
    emb = jnp.squeeze(embedding_matrix, axis=0)                    # (W, E)
    out = batched_single_headed_attention(
        emb[None], w1, b1, w2, b2, matmul_dtype=matmul_dtype)
    return out[0]


def _reference(embedding_matrix, w1, b1, w2, b2):
    emb = jnp.squeeze(embedding_matrix, axis=0)
    x = (emb @ w1.T + b1) @ emb.T
    mask = jnp.tril(x)
    mask = jnp.where(mask == 0, -jnp.inf, mask)
    x = x + mask
    p = jax.nn.softmax(x, axis=1)
    return p @ (emb @ w2.T + b2)


if __name__ == "__main__":
    window_size = 8
    embedding_size = 32
    hidden_size = 32

    key = jax.random.PRNGKey(0)
    k_emb, k_w1, k_b1, k_w2, k_b2, k_batch = jax.random.split(key, 6)

    # deterministic parameter init (PyTorch-Linear-style uniform bounds)
    bound1 = 1.0 / (embedding_size ** 0.5)
    w1 = jax.random.uniform(k_w1, (embedding_size, embedding_size),
                            jnp.float32, -bound1, bound1)
    b1 = jax.random.uniform(k_b1, (embedding_size,), jnp.float32, -bound1, bound1)
    w2 = jax.random.uniform(k_w2, (hidden_size, embedding_size),
                            jnp.float32, -bound1, bound1)
    b2 = jax.random.uniform(k_b2, (hidden_size,), jnp.float32, -bound1, bound1)

    embedding_matrix = jax.random.normal(
        k_emb, (1, window_size, embedding_size), jnp.float32)

    # Module-faithful single-window call.
    out = single_headed_attention(embedding_matrix, w1, b1, w2, b2)
    out = jax.block_until_ready(out)
    ref = _reference(embedding_matrix, w1, b1, w2, b2)
    assert out.shape == (window_size, hidden_size)
    # Tolerance slightly loosened for the EUP approximate reciprocal in softmax.
    assert jnp.allclose(out, ref, atol=5e-3, rtol=5e-3), "mismatch vs reference"

    # Batched path: grid over windows, weights resident in VMEM across steps.
    batch = 4
    emb_batch = jax.random.normal(
        k_batch, (batch, window_size, embedding_size), jnp.float32)
    out_b = jax.block_until_ready(
        batched_single_headed_attention(emb_batch, w1, b1, w2, b2))
    ref_b = jnp.stack([_reference(emb_batch[i:i + 1], w1, b1, w2, b2)
                       for i in range(batch)])
    assert out_b.shape == (batch, window_size, hidden_size)
    assert jnp.allclose(out_b, ref_b, atol=5e-3, rtol=5e-3), "batched mismatch"

    print("KERNEL_OK")
</pallas_src>

<mosaic_0001>
module attributes {stable_mosaic.version = 11 : i64} {
  func.func @_attention_kernel(%arg0: i32, %arg1: memref<1x8x128xf32, #tpu.memory_space<vmem>>, %arg2: memref<128x256xf32, #tpu.memory_space<vmem>>, %arg3: memref<1x256xf32, #tpu.memory_space<vmem>>, %arg4: memref<1x8x128xf32, #tpu.memory_space<vmem>>) attributes {dimension_semantics = [#tpu.dimension_semantics<parallel>], iteration_bounds = array<i64: 1>, scalar_prefetch = 0 : i64, scratch_operands = 0 : i64, tpu.core_type = #tpu.core_type<tc>, window_params = [{transform_indices = @transform_0, window_bounds = array<i64: 1, 8, 128>}, {pipeline_mode = #tpu.pipeline_mode<synchronous>, transform_indices = @transform_1, window_bounds = array<i64: 128, 256>}, {pipeline_mode = #tpu.pipeline_mode<synchronous>, transform_indices = @transform_2, window_bounds = array<i64: 1, 256>}, {transform_indices = @transform_3, window_bounds = array<i64: 1, 8, 128>}]} {
    %c0 = arith.constant 0 : index
    %c0_0 = arith.constant 0 : index
    %c0_1 = arith.constant 0 : index
    %0 = vector.load %arg1[%c0, %c0_0, %c0_1] : memref<1x8x128xf32, #tpu.memory_space<vmem>>, vector<1x8x128xf32>
    %1 = vector.shape_cast %0 : vector<1x8x128xf32> to vector<8x128xf32>
    %c0_2 = arith.constant 0 : index
    %c0_3 = arith.constant 0 : index
    %2 = vector.load %arg2[%c0_2, %c0_3] : memref<128x256xf32, #tpu.memory_space<vmem>>, vector<128x256xf32>
    %cst = arith.constant dense<0.000000e+00> : vector<8x256xf32>
    %3 = tpu.matmul %1, %2, %cst {dimension_numbers = #tpu.dot_dimension_numbers<[1], [0], [0], [1], [0, 0, 1, 1], [], []>} : vector<8x128xf32>, vector<128x256xf32>, vector<8x256xf32> -> vector<8x256xf32>
    %c0_4 = arith.constant 0 : index
    %c0_5 = arith.constant 0 : index
    %4 = vector.load %arg3[%c0_4, %c0_5] : memref<1x256xf32, #tpu.memory_space<vmem>>, vector<1x256xf32>
    %5 = vector.broadcast %4 : vector<1x256xf32> to vector<8x256xf32>
    %6 = arith.addf %3, %5 : vector<8x256xf32>
    %7 = vector.extract_strided_slice %6 {offsets = [0, 0], sizes = [8, 128], strides = [1, 1]} : vector<8x256xf32> to vector<8x128xf32>
    %8 = vector.extract_strided_slice %6 {offsets = [0, 128], sizes = [8, 128], strides = [1, 1]} : vector<8x256xf32> to vector<8x128xf32>
    %cst_6 = arith.constant dense<0.000000e+00> : vector<8x8xf32>
    %9 = tpu.matmul %7, %1, %cst_6 {dimension_numbers = #tpu.dot_dimension_numbers<[1], [1], [0], [0], [0, 0, 1, 0], [], []>} : vector<8x128xf32>, vector<8x128xf32>, vector<8x8xf32> -> vector<8x8xf32>
    %10 = tpu.iota {dimensions = array<i32: 0>} : vector<8x8xi32>
    %11 = tpu.iota {dimensions = array<i32: 1>} : vector<8x8xi32>
    %12 = arith.cmpi sge, %10, %11 : vector<8x8xi32>
    %cst_7 = arith.constant 0.000000e+00 : f32
    %13 = vector.broadcast %cst_7 : f32 to vector<8x8xf32>
    %14 = arith.cmpf one, %9, %13 : vector<8x8xf32>
    %15 = arith.andi %12, %14 : vector<8x8xi1>
    %16 = arith.addf %9, %9 : vector<8x8xf32>
    %cst_8 = arith.constant 0xFF800000 : f32
    %17 = vector.broadcast %cst_8 : f32 to vector<8x8xf32>
    %18 = arith.select %15, %16, %17 : vector<8x8xi1>, vector<8x8xf32>
    %cst_9 = arith.constant dense<0xFF800000> : vector<8xf32>
    %19 = vector.multi_reduction <maximumf>, %18, %cst_9 [1] : vector<8x8xf32> to vector<8xf32>
    %20 = vector.shape_cast %19 : vector<8xf32> to vector<8x1xf32>
    %21 = vector.broadcast %20 : vector<8x1xf32> to vector<8x8xf32>
    %22 = arith.subf %18, %21 : vector<8x8xf32>
    %23 = math.exp %22 : vector<8x8xf32>
    %cst_10 = arith.constant dense<0.000000e+00> : vector<8xf32>
    %24 = vector.multi_reduction <add>, %23, %cst_10 [1] : vector<8x8xf32> to vector<8xf32>
    %25 = vector.shape_cast %24 : vector<8xf32> to vector<8x1xf32>
    %26 = tpu.reciprocal %25 {approx = true} : vector<8x1xf32> -> vector<8x1xf32>
    %27 = vector.broadcast %26 : vector<8x1xf32> to vector<8x8xf32>
    %28 = arith.mulf %23, %27 : vector<8x8xf32>
    %cst_11 = arith.constant dense<0.000000e+00> : vector<8x128xf32>
    %29 = tpu.matmul %28, %8, %cst_11 {dimension_numbers = #tpu.dot_dimension_numbers<[1], [0], [0], [1], [0, 0, 1, 1], [], []>} : vector<8x8xf32>, vector<8x128xf32>, vector<8x128xf32> -> vector<8x128xf32>
    %c0_12 = arith.constant 0 : index
    %c0_13 = arith.constant 0 : index
    %c0_14 = arith.constant 0 : index
    %30 = vector.load %arg4[%c0_12, %c0_13, %c0_14] : memref<1x8x128xf32, #tpu.memory_space<vmem>>, vector<1x8x128xf32>
    %31 = vector.shape_cast %30 : vector<1x8x128xf32> to vector<8x128xf32>
    %32 = vector.shape_cast %29 : vector<8x128xf32> to vector<1x8x128xf32>
    tpu.vector_store %arg4[%c0_12, %c0_13, %c0_14], %32 {strides = array<i32>} : memref<1x8x128xf32, #tpu.memory_space<vmem>>, vector<1x8x128xf32>,
    return
  }
  func.func @transform_0(%arg0: i32) -> (i32, i32, i32) {
    %c0_i32 = arith.constant 0 : i32
    %c0_i32_0 = arith.constant 0 : i32
    %c0_i32_1 = arith.constant 0 : i32
    return %arg0, %c0_i32, %c0_i32_0 : i32, i32, i32
  }
  func.func @transform_1(%arg0: i32) -> (i32, i32) {
    %c0_i32 = arith.constant 0 : i32
    %c0_i32_0 = arith.constant 0 : i32
    %c0_i32_1 = arith.constant 0 : i32
    return %c0_i32, %c0_i32_0 : i32, i32
  }
  func.func @transform_2(%arg0: i32) -> (i32, i32) {
    %c0_i32 = arith.constant 0 : i32
    %c0_i32_0 = arith.constant 0 : i32
    %c0_i32_1 = arith.constant 0 : i32
    return %c0_i32, %c0_i32_0 : i32, i32
  }
  func.func @transform_3(%arg0: i32) -> (i32, i32, i32) {
    %c0_i32 = arith.constant 0 : i32
    %c0_i32_0 = arith.constant 0 : i32
    %c0_i32_1 = arith.constant 0 : i32
    return %arg0, %c0_i32, %c0_i32_0 : i32, i32, i32
  }
}

</mosaic_0001>

<llo_original>
// kernel: tpu_custom_call.1
$region0: #{tpu_custom_call.1}
  #allocation0 [shape = 'u32[]', space=smem, size = 0x4, offset = 0x4, fixed_abs, tag = 'smem constant byte address 0x4 - core index']
  #allocation1 [shape = 'u32[72,128]{1,0:T(1,128)}', space=vmem, size = 0x9000, scoped, tag = 'internal scratch']
  %s0 = inlined_call_operand.hbm [shape: f32[1,8,128], index: 0, kind: input, shape index: {}]
  %s1 = inlined_call_operand.hbm [shape: f32[128,256], index: 1, kind: input, shape index: {}]
  %s2 = inlined_call_operand.hbm [shape: f32[1,256], index: 2, kind: input, shape index: {}]
  %s3 = inlined_call_operand.hbm [shape: f32[1,8,128], index: 3, kind: output, shape index: {}]
  %s4 = sld [smem:[#allocation0]]
  $region34: #{tpu_custom_call.1} parent=0
    _
  %s6 = ssub.s32 1, %s4
  %s7 = scalar_select 0, %s6, %s4
  $region1: #{tpu_custom_call.1} parent=0
    #allocation2 [shape = 'u8[4096]{0}', space=vmem, size = 0x1000, scoped, tag = 'input window, operand 0, single buffered']
    #allocation3 [shape = 's32[1]{0}', space=sflag, size = 0x4, scoped, tag = 'scoped memory for tpu_custom_call.1']
    #allocation4 [shape = 's32[1]{0}', space=sflag, size = 0x4, scoped, tag = 'scoped memory for tpu_custom_call.1']
    #allocation5 [shape = 'u8[131072]{0}', space=vmem, size = 0x20000, scoped, tag = 'input window, operand 1, single buffered']
    #allocation6 [shape = 's32[1]{0}', space=sflag, size = 0x4, scoped, tag = 'scoped memory for tpu_custom_call.1']
    #allocation7 [shape = 'u8[1024]{0}', space=vmem, size = 0x400, scoped, tag = 'input window, operand 2, single buffered']
    #allocation8 [shape = 'u8[4096]{0}', space=vmem, size = 0x1000, scoped, tag = 'output window, operand 0, single buffered']
    %8 = vsyncpa [#allocation3], 0
    %9 = vsyncpa [#allocation6], 0
    %10 = vsyncpa [#allocation4], 0
    // Predicated region
    $region2: #{tpu_custom_call.1} parent=1 // pred_check
      _
    $region3: #{tpu_custom_call.1} parent=1 // pred_check_branch
      %12 = sbr.rel (0) target = $region5
    $region4: #{tpu_custom_call.1} parent=1 // pred_region
      %14 = vsyncadd [#allocation3], 0
      %s16 = sshll.u32 %s0, 4
      %s17 = int_to_ptr.hbm [resolvable:$true] %s16
      %s18 = sshll.u32 [#allocation2], 4
      %s19 = int_to_ptr.vmem [resolvable:$true] %s18
      %21 = dma.hbm_to_vmem [thread:$0]  %s17, 128, %s19, [#allocation3]
    $region5: #{tpu_custom_call.1} parent=1 // pred_fallthru
      _
    // Predicated region
    $region6: #{tpu_custom_call.1} parent=1 // pred_check
      _
    $region7: #{tpu_custom_call.1} parent=1 // pred_check_branch
      %23 = sbr.rel (0) target = $region9
    $region8: #{tpu_custom_call.1} parent=1 // pred_region
      %25 = vsyncadd [#allocation6], 0
      %s26 = sshll.u32 %s1, 4
      %s27 = int_to_ptr.hbm [resolvable:$true] %s26
      %s28 = sshll.u32 [#allocation5], 4
      %s29 = int_to_ptr.vmem [resolvable:$true] %s28
      %34 = dma.hbm_to_vmem [thread:$0]  %s27, 4096, %s29, [#allocation6], 256, 256, 16
    $region9: #{tpu_custom_call.1} parent=1 // pred_fallthru
      _
    // Predicated region
    $region10: #{tpu_custom_call.1} parent=1 // pred_check
      _
    $region11: #{tpu_custom_call.1} parent=1 // pred_check_branch
      %36 = sbr.rel (0) target = $region13
    $region12: #{tpu_custom_call.1} parent=1 // pred_region
      %38 = vsyncadd [#allocation6], 0
      %s40 = sshll.u32 %s2, 4
      %s41 = int_to_ptr.hbm [resolvable:$true] %s40
      %s42 = sshll.u32 [#allocation7], 4
      %s43 = int_to_ptr.vmem [resolvable:$true] %s42
      %45 = dma.hbm_to_vmem [thread:$0]  %s41, 32, %s43, [#allocation6]
    $region13: #{tpu_custom_call.1} parent=1 // pred_fallthru
      _
    // Predicated region
    $region14: #{tpu_custom_call.1} parent=1 // pred_check
      _
    $region15: #{tpu_custom_call.1} parent=1 // pred_check_branch
      %47 = sbr.rel (0) target = $region17
    $region16: #{tpu_custom_call.1} parent=1 // pred_region
      %49 = dma.done [#allocation3], 128
    $region17: #{tpu_custom_call.1} parent=1 // pred_fallthru
      _
    // Predicated region
    $region18: #{tpu_custom_call.1} parent=1 // pred_check
      _
    $region19: #{tpu_custom_call.1} parent=1 // pred_check_branch
      %51 = sbr.rel (0) target = $region21
    $region20: #{tpu_custom_call.1} parent=1 // pred_region
      %53 = dma.done [#allocation6], 4096
    $region21: #{tpu_custom_call.1} parent=1 // pred_fallthru
      _
    // Predicated region
    $region22: #{tpu_custom_call.1} parent=1 // pred_check
      _
    $region23: #{tpu_custom_call.1} parent=1 // pred_check_branch
      %55 = sbr.rel (0) target = $region25
    $region24: #{tpu_custom_call.1} parent=1 // pred_region
      %57 = dma.done [#allocation6], 32
    $region25: #{tpu_custom_call.1} parent=1 // pred_fallthru
      _
    %v58 = vld [vmem:[#allocation2] sm:$0xff]
    %v59 = vld [vmem:[#allocation5] sm:$0xff]
    %v60 = vld [vmem:[#allocation5 + $0x8] sm:$0xff]
    %v61 = vld [vmem:[#allocation5 + $0x10] sm:$0xff]
    %v62 = vld [vmem:[#allocation5 + $0x18] sm:$0xff]
    %v63 = vld [vmem:[#allocation5 + $0x20] sm:$0xff]
    %v64 = vld [vmem:[#allocation5 + $0x28] sm:$0xff]
    %v65 = vld [vmem:[#allocation5 + $0x30] sm:$0xff]
    %v66 = vld [vmem:[#allocation5 + $0x38] sm:$0xff]
    %v67 = vld [vmem:[#allocation5 + $0x40] sm:$0xff]
    %v68 = vld [vmem:[#allocation5 + $0x48] sm:$0xff]
    %v69 = vld [vmem:[#allocation5 + $0x50] sm:$0xff]
    %v70 = vld [vmem:[#allocation5 + $0x58] sm:$0xff]
    %v71 = vld [vmem:[#allocation5 + $0x60] sm:$0xff]
    %v72 = vld [vmem:[#allocation5 + $0x68] sm:$0xff]
    %v73 = vld [vmem:[#allocation5 + $0x70] sm:$0xff]
    %v74 = vld [vmem:[#allocation5 + $0x78] sm:$0xff]
    %v75 = vld [vmem:[#allocation5 + $0x80] sm:$0xff]
    %v76 = vld [vmem:[#allocation5 + $0x88] sm:$0xff]
    %v77 = vld [vmem:[#allocation5 + $0x90] sm:$0xff]
    %v78 = vld [vmem:[#allocation5 + $0x98] sm:$0xff]
    %v79 = vld [vmem:[#allocation5 + $0xa0] sm:$0xff]
    %v80 = vld [vmem:[#allocation5 + $0xa8] sm:$0xff]
    %v81 = vld [vmem:[#allocation5 + $0xb0] sm:$0xff]
    %v82 = vld [vmem:[#allocation5 + $0xb8] sm:$0xff]
    %v83 = vld [vmem:[#allocation5 + $0xc0] sm:$0xff]
    %v84 = vld [vmem:[#allocation5 + $0xc8] sm:$0xff]
    %v85 = vld [vmem:[#allocation5 + $0xd0] sm:$0xff]
    %v86 = vld [vmem:[#allocation5 + $0xd8] sm:$0xff]
    %v87 = vld [vmem:[#allocation5 + $0xe0] sm:$0xff]
    %v88 = vld [vmem:[#allocation5 + $0xe8] sm:$0xff]
    %v89 = vld [vmem:[#allocation5 + $0xf0] sm:$0xff]
    %v90 = vld [vmem:[#allocation5 + $0xf8] sm:$0xff]
    %v91 = vld [vmem:[#allocation7] sm:$0x3]
    %v93 = vperm.slane %v91, 0
    %v94 = vperm.slane %v91, 1
    %97 = vmatpush.msra.mxu0 %v89
    %98 = vmatpush.msra.mxu0 %v87
    %99 = vmatpush.msra.mxu0 %v85
    %100 = vmatpush.msra.mxu0 %v83
    %101 = vmatpush.msra.mxu0 %v81
    %102 = vmatpush.msra.mxu0 %v79
    %103 = vmatpush.msra.mxu0 %v77
    %104 = vmatpush.msra.mxu0 %v75
    %105 = vmatpush.msra.mxu0 %v73
    %106 = vmatpush.msra.mxu0 %v71
    %107 = vmatpush.msra.mxu0 %v69
    %108 = vmatpush.msra.mxu0 %v67
    %109 = vmatpush.msra.mxu0 %v65
    %110 = vmatpush.msra.mxu0 %v63
    %111 = vmatpush.msra.mxu0 %v61
    %112 = vmatpush.msra.mxu0 %v59
    %113 = vmatmul.f32.gmra.mxu0 %v58
    %v114 = vpop.f32.mrf.mxu0
    %v115 = vadd.f32 %v93, %v114
    %116 = vdwg.mxu0
    %117 = vmatpush.msra.mxu0 %v90
    %118 = vmatpush.msra.mxu0 %v88
    %119 = vmatpush.msra.mxu0 %v86
    %120 = vmatpush.msra.mxu0 %v84
    %121 = vmatpush.msra.mxu0 %v82
    %122 = vmatpush.msra.mxu0 %v80
    %123 = vmatpush.msra.mxu0 %v78
    %124 = vmatpush.msra.mxu0 %v76
    %125 = vmatpush.msra.mxu0 %v74
    %126 = vmatpush.msra.mxu0 %v72
    %127 = vmatpush.msra.mxu0 %v70
    %128 = vmatpush.msra.mxu0 %v68
    %129 = vmatpush.msra.mxu0 %v66
    %130 = vmatpush.msra.mxu0 %v64
    %131 = vmatpush.msra.mxu0 %v62
    %132 = vmatpush.msra.mxu0 %v60
    %133 = vmatmul.f32.gmra.mxu0 %v58
    %v134 = vpop.f32.mrf.mxu0
    %v135 = vadd.f32 %v94, %v134
    %136 = vdwg.mxu0
    %137 = vmatpush.xpose.msra.mxu0 0.0
    %138 = vmatpush.xpose.msra.mxu0 0.0
    %139 = vmatpush.xpose.msra.mxu0 0.0
    %140 = vmatpush.xpose.msra.mxu0 0.0
    %141 = vmatpush.xpose.msra.mxu0 0.0
    %142 = vmatpush.xpose.msra.mxu0 0.0
    %143 = vmatpush.xpose.msra.mxu0 0.0
    %144 = vmatpush.xpose.msra.mxu0 0.0
    %145 = vmatpush.xpose.msra.mxu0 0.0
    %146 = vmatpush.xpose.msra.mxu0 0.0
    %147 = vmatpush.xpose.msra.mxu0 0.0
    %148 = vmatpush.xpose.msra.mxu0 0.0
    %149 = vmatpush.xpose.msra.mxu0 0.0
    %150 = vmatpush.xpose.msra.mxu0 0.0
    %151 = vmatpush.xpose.msra.mxu0 0.0
    %152 = vmatpush.xpose.msra.mxu0 %v58
    %153 = vmatmul.f32.gmra.mxu0 %v115
    %v154 = vpop.f32.mrf.mxu0
    %v155 = vadd.f32 0.0, %v154
    %156 = vdwg.mxu0
    %v157 = vlaneseq
    %v158 = vshrl.u32 %v157, 7
    %v159 = vlaneseq
    %v160 = vand.u32 %v159, 127
    %vm161 = vcmp.ge.s32.totalorder %v158, %v160
    %vm162 = vcmp.ne.f32.partialorder %v155, 0.0
    %vm163 = vmand %vm161, %vm162
    %v164 = vadd.f32 %v155, %v155
    %v165 = vsel %vm163, %v164, -inf
    %vm166 = vcmask 64512
    %v167 = vsel %vm166, %v165, -inf
    %168 = vmax.xlane.f32.xlu0 %v167
    %v169 = vpop.xlane.xlu0 %168
    %v170 = vsub.f32 %v165, %v169
    %v171 = vmul.f32 %v170, 1.442695
    %v172 = vpow.pop %v171
    %v173 = vsel %vm166, %v172, 0.0
    %174 = vadd.xlane.f32.xlu0 %v173
    %v175 = vpop.xlane.xlu0 %174
    %v176 = vrcp.pop %v175
    %v177 = vmul.f32 %v172, %v176
    %v179 = vsel %vm166, %v177, 0
    %181 = vmatpush.msra.mxu0 0.0
    %182 = vmatpush.msra.mxu0 0.0
    %183 = vmatpush.msra.mxu0 0.0
    %184 = vmatpush.msra.mxu0 0.0
    %185 = vmatpush.msra.mxu0 0.0
    %186 = vmatpush.msra.mxu0 0.0
    %187 = vmatpush.msra.mxu0 0.0
    %188 = vmatpush.msra.mxu0 0.0
    %189 = vmatpush.msra.mxu0 0.0
    %190 = vmatpush.msra.mxu0 0.0
    %191 = vmatpush.msra.mxu0 0.0
    %192 = vmatpush.msra.mxu0 0.0
    %193 = vmatpush.msra.mxu0 0.0
    %194 = vmatpush.msra.mxu0 0.0
    %195 = vmatpush.msra.mxu0 0.0
    %196 = vmatpush.msra.mxu0 %v135
    %197 = vmatmul.f32.gmra.mxu0 %v179
    %v198 = vpop.f32.mrf.mxu0
    %v199 = vadd.f32 0.0, %v198
    %200 = vdwg.mxu0
    %201 = vst [vmem:[#allocation8] sm:$0xff] %v199
    // Predicated region
    $region26: #{tpu_custom_call.1} parent=1 // pred_check
      _
    $region27: #{tpu_custom_call.1} parent=1 // pred_check_branch
      %203 = sbr.rel (0) target = $region29
    $region28: #{tpu_custom_call.1} parent=1 // pred_region
      %205 = vsyncadd [#allocation4], 0
      %s207 = sshll.u32 [#allocation8], 4
      %s208 = int_to_ptr.vmem [resolvable:$true] %s207
      %s209 = sshll.u32 %s3, 4
      %s210 = int_to_ptr.hbm [resolvable:$true] %s209
      %212 = dma.vmem_to_hbm [thread:$0]  %s208, 128, %s210, [#allocation4]
    $region29: #{tpu_custom_call.1} parent=1 // pred_fallthru
      _
    // Predicated region
    $region30: #{tpu_custom_call.1} parent=1 // pred_check
      _
    $region31: #{tpu_custom_call.1} parent=1 // pred_check_branch
      %214 = sbr.rel (0) target = $region33
    $region32: #{tpu_custom_call.1} parent=1 // pred_region
      %216 = dma.done [#allocation4], 128
    $region33: #{tpu_custom_call.1} parent=1 // pred_fallthru
      _
    %217 = vsyncpa [#allocation3], 1
    %218 = vsyncpa [#allocation6], 1
    %219 = vsyncpa [#allocation4], 1

</llo_original>
